<compile_context>
chip_gen: v7x
topology: tpu7x:2x2x1
jax: 0.10.0
libtpu: 0.0.40
codegen_flags: <defaults>
</compile_context>

<pallas_src>
import functools

import jax
import jax.numpy as jnp
import numpy as np
from jax.experimental import pallas as pl
from jax.experimental.pallas import tpu as pltpu


RC = 8  # rows per compute chunk: one (8, 128) f32 vreg per channel slice


# ---------------------------------------------------------------------------
# Pallas kernel
# ---------------------------------------------------------------------------
def _yolo_loss_kernel(anc_ref, pred_ref, tgt_ref, out_ref, *,
                      valid_cols, num_classes):
    a = pl.program_id(0)          # anchor index          ("parallel")
    i = pl.program_id(1)          # row-block index       ("arbitrary" reduction)

    @pl.when(i == 0)
    def _init():
        out_ref[...] = jnp.zeros_like(out_ref)

    # Per-step anchor scalars (w, h, 1/w, 1/h) from the tiny SMEM table --
    # constant over the whole block, so no per-lane anchor reconstruction.
    aw = anc_ref[a, 0]
    ah = anc_ref[a, 1]
    iaw = anc_ref[a, 2]
    iah = anc_ref[a, 3]

    R = pred_ref.shape[2]         # rows (of 128 lanes) in this grid step
    n_sub = R // RC               # static chunk count

    # Column offset of each element within an (RC, 128) chunk (hoisted).
    offs = (jax.lax.broadcasted_iota(jnp.int32, (RC, 128), 0) * 128
            + jax.lax.broadcasted_iota(jnp.int32, (RC, 128), 1))
    base_col = i * (R * 128)      # first column of this block in the anchor slab

    def chunk(c, carry):
        s_bce, s_ncnt, s_obj, s_ocnt = carry
        r0 = pl.multiple_of(c * RC, RC)

        def ld(ref, ch):
            return ref[ch, 0, pl.ds(r0, RC), :].astype(jnp.float32)

        # validity mask for the padded tail of this anchor's column slab
        col = offs + (base_col + r0 * 128)
        valid = col < valid_cols

        t0 = ld(tgt_ref, 0)                       # objectness target
        v_obj = valid & (t0 == 1.0)
        v_noobj = valid & (t0 == 0.0)

        # ---- no-object loss: BCE-with-logits on channel 0 (reuse exp(-|x|)) --
        x0 = ld(pred_ref, 0)
        e0 = jnp.exp(-jnp.abs(x0))
        bce = jnp.maximum(x0, 0.0) - x0 * t0 + jnp.log1p(e0)
        inv1pe = pl.reciprocal(1.0 + e0, approx=True)
        sig0 = jnp.where(x0 >= 0.0, inv1pe, e0 * inv1pe)   # sigmoid(x0)

        # ---- decode predicted box, midpoint IoU ------------------------------
        sx = jax.nn.sigmoid(ld(pred_ref, 1))
        sy = jax.nn.sigmoid(ld(pred_ref, 2))
        pw = ld(pred_ref, 3)
        ph = ld(pred_ref, 4)
        bw = jnp.exp(pw) * aw
        bh = jnp.exp(ph) * ah
        tx = ld(tgt_ref, 1)
        ty = ld(tgt_ref, 2)
        tw = ld(tgt_ref, 3)
        th = ld(tgt_ref, 4)

        iw = jnp.maximum(jnp.minimum(sx + 0.5 * bw, tx + 0.5 * tw)
                         - jnp.maximum(sx - 0.5 * bw, tx - 0.5 * tw), 0.0)
        ih = jnp.maximum(jnp.minimum(sy + 0.5 * bh, ty + 0.5 * th)
                         - jnp.maximum(sy - 0.5 * bh, ty - 0.5 * th), 0.0)
        inter = iw * ih
        union = jnp.abs(bw * bh) + jnp.abs(tw * th) - inter + 1e-6
        ious = inter * pl.reciprocal(union, approx=True)

        # ---- object loss: MSE(sigmoid(pred0), iou * target0) -----------------
        obj_err = (sig0 - ious * t0) ** 2

        # ---- box regression loss (no concatenation) --------------------------
        twl = jnp.log(1e-6 + tw * iaw)
        thl = jnp.log(1e-6 + th * iah)
        box_err = ((sx - tx) ** 2 + (sy - ty) ** 2
                   + (pw - twl) ** 2 + (ph - thl) ** 2)

        # ---- class cross-entropy (two-pass logsumexp over NC channels) -------
        cls_idx = ld(tgt_ref, 5)
        m = ld(pred_ref, 5)
        for ch in range(1, num_classes):
            m = jnp.maximum(m, ld(pred_ref, 5 + ch))
        se = jnp.zeros_like(m)
        picked = jnp.zeros_like(m)
        for ch in range(num_classes):
            lg = ld(pred_ref, 5 + ch)
            se = se + jnp.exp(lg - m)
            picked = picked + jnp.where(cls_idx == float(ch), lg, 0.0)
        ce = m + jnp.log(se) - picked

        # ---- masked per-lane accumulation (pure VPU adds) ---------------------
        one = jnp.ones_like(t0)
        zero = jnp.zeros_like(t0)
        s_bce = s_bce + jnp.where(v_noobj, bce, zero)
        s_ncnt = s_ncnt + jnp.where(v_noobj, one, zero)
        s_obj = s_obj + jnp.where(v_obj, obj_err + 0.25 * box_err + ce, zero)
        s_ocnt = s_ocnt + jnp.where(v_obj, one, zero)
        return s_bce, s_ncnt, s_obj, s_ocnt

    z = jnp.zeros((RC, 128), jnp.float32)
    s_bce, s_ncnt, s_obj, s_ocnt = jax.lax.fori_loop(
        0, n_sub, chunk, (z, z, z, z), unroll=(2 if n_sub > 1 else 1))

    # accumulate into the output-resident (32, 128) block
    out_ref[0:8, :] += s_bce
    out_ref[8:16, :] += s_ncnt
    out_ref[16:24, :] += s_obj
    out_ref[24:32, :] += s_ocnt


# ---------------------------------------------------------------------------
# Wrapper: layout, grid sizing, pallas_call, tiny scalar epilogue
# ---------------------------------------------------------------------------
@functools.partial(jax.jit, static_argnames=("row_tile",))
def yolo_loss_pallas(pred, target, anchors, *, row_tile=256):
    """Forward pass of YOLOLoss.

    pred:    (B, A, S, S, 5 + NC)
    target:  (B, A, S, S, 6)      [obj, x, y, w, h, cls]
    anchors: (A, 2)
    """
    B, A, S1, S2, Cp = pred.shape
    Ct = target.shape[-1]
    NC = Cp - 5
    assert Ct >= 6 and NC >= 1
    assert anchors.shape == (A, 2)
    assert row_tile % RC == 0 and row_tile > 0

    cols = B * S1 * S2                              # columns per anchor slab

    # anchors (+ reciprocals) as a tiny (A, 4) SMEM table: [w, h, 1/w, 1/h]
    anc_f32 = anchors.astype(jnp.float32)
    anc_tbl = jnp.concatenate([anc_f32, 1.0 / anc_f32], axis=-1)

    # Row / grid sizing: R rows of 128 lanes per grid step, balanced so the
    # (A, n_inner) grid covers each anchor slab exactly (pad <= R*128 columns,
    # all excluded in-kernel via the static `valid_cols` bound).
    R_a = pl.cdiv(cols, RC * 128) * RC              # rows, multiple of 8
    n_inner = pl.cdiv(R_a, min(row_tile, R_a))
    R = pl.cdiv(pl.cdiv(R_a, n_inner), RC) * RC     # balanced rows per step
    R_a = n_inner * R
    pad_cols = R_a * 128 - cols

    # Channels-major, anchor-major, lane/sublane-dense layout (C, A, R_a, 128).
    # Source dtype is preserved (bf16 inputs stay bf16 over HBM).
    def to_slab(x, C):
        x = jnp.transpose(x, (4, 1, 0, 2, 3)).reshape(C, A, cols)
        if pad_cols:
            x = jnp.pad(x, ((0, 0), (0, 0), (0, pad_cols)))
        return x.reshape(C, A, R_a, 128)

    pred_t = to_slab(pred, Cp)
    tgt_t = to_slab(target, Ct)

    kernel = functools.partial(_yolo_loss_kernel,
                               valid_cols=cols, num_classes=NC)

    partials = pl.pallas_call(
        kernel,
        out_shape=jax.ShapeDtypeStruct((32, A * 128), jnp.float32),
        grid_spec=pltpu.PrefetchScalarGridSpec(
            num_scalar_prefetch=0,
            grid=(A, n_inner),
            in_specs=[
                pl.BlockSpec(memory_space=pltpu.MemorySpace.SMEM),   # anchors
                pl.BlockSpec((Cp, 1, R, 128), lambda a, i: (0, a, i, 0)),
                pl.BlockSpec((Ct, 1, R, 128), lambda a, i: (0, a, i, 0)),
            ],
            out_specs=pl.BlockSpec((32, 128), lambda a, i: (0, a)),
        ),
        compiler_params=pltpu.CompilerParams(
            dimension_semantics=("parallel", "arbitrary")),
    )(anc_tbl, pred_t, tgt_t)

    # Tiny scalar epilogue: fold the per-anchor (32, 128) partials.
    # rows 0:8 noobj-BCE sum, 8:16 noobj count, 16:24 obj sum, 24:32 obj count.
    sums = jnp.sum(partials.reshape(4, 8, A * 128), axis=(1, 2))
    no_object_loss = sums[0] / sums[1]      # NaN if no noobj cells (same as ref)
    obj_box_cls_loss = sums[2] / sums[3]    # object + box/4 + class
    return no_object_loss + obj_box_cls_loss


# ---------------------------------------------------------------------------
# Pure-JAX reference (mirrors the PyTorch forward) for verification
# ---------------------------------------------------------------------------
def yolo_loss_ref(pred, target, anchors):
    obj = target[..., 0] == 1
    noobj = target[..., 0] == 0
    anc = anchors.reshape(1, 3, 1, 1, 2)

    x0 = pred[..., 0]
    t0 = target[..., 0]
    bce = jnp.maximum(x0, 0.0) - x0 * t0 + jnp.log1p(jnp.exp(-jnp.abs(x0)))
    no_object_loss = jnp.sum(jnp.where(noobj, bce, 0.0)) / jnp.sum(noobj)

    sig_xy = jax.nn.sigmoid(pred[..., 1:3])
    exp_wh = jnp.exp(pred[..., 3:5]) * anc
    bp = jnp.concatenate([sig_xy, exp_wh], axis=-1)
    tb = target[..., 1:5]

    def corners(b):
        return (b[..., 0] - b[..., 2] / 2, b[..., 1] - b[..., 3] / 2,
                b[..., 0] + b[..., 2] / 2, b[..., 1] + b[..., 3] / 2)

    b1x1, b1y1, b1x2, b1y2 = corners(bp)
    b2x1, b2y1, b2x2, b2y2 = corners(tb)
    inter = (jnp.clip(jnp.minimum(b1x2, b2x2) - jnp.maximum(b1x1, b2x1), 0.0)
             * jnp.clip(jnp.minimum(b1y2, b2y2) - jnp.maximum(b1y1, b2y1), 0.0))
    area1 = jnp.abs((b1x2 - b1x1) * (b1y2 - b1y1))
    area2 = jnp.abs((b2x2 - b2x1) * (b2y2 - b2y1))
    ious = inter / (area1 + area2 - inter + 1e-6)

    sig0 = jax.nn.sigmoid(x0)
    object_loss = jnp.sum(jnp.where(obj, (sig0 - ious * t0) ** 2, 0.0)) / jnp.sum(obj)

    pred_box = jnp.concatenate([sig_xy, pred[..., 3:5]], axis=-1)
    tgt_box = jnp.concatenate(
        [target[..., 1:3], jnp.log(1e-6 + target[..., 3:5] / anc)], axis=-1)
    box_loss = (jnp.sum(jnp.where(obj[..., None], (pred_box - tgt_box) ** 2, 0.0))
                / (4.0 * jnp.sum(obj)))

    logits = pred[..., 5:]
    lse = jax.scipy.special.logsumexp(logits, axis=-1)
    cls = target[..., 5].astype(jnp.int32)
    picked = jnp.take_along_axis(logits, cls[..., None], axis=-1)[..., 0]
    class_loss = jnp.sum(jnp.where(obj, lse - picked, 0.0)) / jnp.sum(obj)

    return box_loss + object_loss + no_object_loss + class_loss


# ---------------------------------------------------------------------------
if __name__ == "__main__":
    # NOTE: the PyTorch module mutates pred/target in place; only the returned
    # scalar loss is reproduced here (the mutation has no effect on the value).
    def make_inputs(key, B, A, S, NC):
        Cp = 5 + NC
        k1, k2, k3, k4, k5 = jax.random.split(key, 5)
        pred = jax.random.normal(k1, (B, A, S, S, Cp), jnp.float32)
        # objectness flag in {0, 1, -1} (-1 = ignored cells, like real targets)
        flag_raw = jax.random.randint(k2, (B, A, S, S), 0, 4)
        obj_flag = jnp.where(flag_raw == 3, -1.0,
                             jnp.where(flag_raw >= 1, 1.0, 0.0)).astype(jnp.float32)
        xy = jax.random.uniform(k3, (B, A, S, S, 2), jnp.float32, 0.05, 0.95)
        wh = jax.random.uniform(k4, (B, A, S, S, 2), jnp.float32, 0.1, 2.0)
        cls = jax.random.randint(k5, (B, A, S, S, 1), 0, NC).astype(jnp.float32)
        target = jnp.concatenate([obj_flag[..., None], xy, wh, cls], axis=-1)
        return pred, target

    anchors = jnp.array([[0.28, 0.22], [0.38, 0.48], [0.90, 0.78]], jnp.float32)
    key = jax.random.PRNGKey(0)
    k_a, k_b, k_c = jax.random.split(key, 3)

    # Case 1: tiny input -> one row-block per anchor, heavy tail masking.
    pred1, tgt1 = make_inputs(k_a, 2, 3, 8, 4)
    out1 = jax.block_until_ready(yolo_loss_pallas(pred1, tgt1, anchors))
    ref1 = yolo_loss_ref(pred1, tgt1, anchors)
    np.testing.assert_allclose(np.asarray(out1), np.asarray(ref1),
                               rtol=2e-3, atol=2e-3)

    # Case 2: non-128-multiple size (S=13) with default tiling.
    pred2, tgt2 = make_inputs(k_b, 2, 3, 13, 4)
    out2 = jax.block_until_ready(yolo_loss_pallas(pred2, tgt2, anchors))
    ref2 = yolo_loss_ref(pred2, tgt2, anchors)
    np.testing.assert_allclose(np.asarray(out2), np.asarray(ref2),
                               rtol=2e-3, atol=2e-3)

    # Case 3: larger grid (S=24) -> exercises (a) the multi-step inner
    # reduction (row_tile=8) and (b) the in-kernel chunk loop (default tile).
    pred3, tgt3 = make_inputs(k_c, 2, 3, 24, 4)
    ref3 = yolo_loss_ref(pred3, tgt3, anchors)
    out3a = jax.block_until_ready(
        yolo_loss_pallas(pred3, tgt3, anchors, row_tile=8))
    np.testing.assert_allclose(np.asarray(out3a), np.asarray(ref3),
                               rtol=2e-3, atol=2e-3)
    out3b = jax.block_until_ready(
        yolo_loss_pallas(pred3, tgt3, anchors, row_tile=256))
    np.testing.assert_allclose(np.asarray(out3b), np.asarray(ref3),
                               rtol=2e-3, atol=2e-3)

    print("KERNEL_OK")
</pallas_src>

<mosaic_0001>
module attributes {stable_mosaic.version = 11 : i64} {
  func.func @_yolo_loss_kernel(%arg0: i32, %arg1: i32, %arg2: memref<3x4xf32, #tpu.memory_space<smem>>, %arg3: memref<9x1x8x128xf32, #tpu.memory_space<vmem>>, %arg4: memref<6x1x8x128xf32, #tpu.memory_space<vmem>>, %arg5: memref<32x128xf32, #tpu.memory_space<vmem>>) attributes {dimension_semantics = [#tpu.dimension_semantics<parallel>, #tpu.dimension_semantics<arbitrary>], iteration_bounds = array<i64: 3, 1>, scalar_prefetch = 0 : i64, scratch_operands = 0 : i64, tpu.core_type = #tpu.core_type<tc>, window_params = [{transform_indices = @transform_0, window_bounds = array<i64: 3, 4>}, {transform_indices = @transform_1, window_bounds = array<i64: 9, 1, 8, 128>}, {transform_indices = @transform_2, window_bounds = array<i64: 6, 1, 8, 128>}, {transform_indices = @transform_3, window_bounds = array<i64: 32, 128>}]} {
    %c0_i32 = arith.constant 0 : i32
    %0 = arith.cmpi eq, %arg1, %c0_i32 : i32
    %1 = arith.extui %0 : i1 to i32
    %c0_i32_0 = arith.constant 0 : i32
    %2 = arith.cmpi ne, %1, %c0_i32_0 : i32
    scf.if %2 {
      %cst_104 = arith.constant 0.000000e+00 : f32
      %257 = vector.broadcast %cst_104 : f32 to vector<32x128xf32>
      %c0_105 = arith.constant 0 : index
      %c0_106 = arith.constant 0 : index
      %258 = vector.load %arg5[%c0_105, %c0_106] : memref<32x128xf32, #tpu.memory_space<vmem>>, vector<32x128xf32>
      tpu.vector_store %arg5[%c0_105, %c0_106], %257 {strides = array<i32>} : memref<32x128xf32, #tpu.memory_space<vmem>>, vector<32x128xf32>,
    } else {
    }
    %3 = arith.index_cast %arg0 : i32 to index
    %c0 = arith.constant 0 : index
    %4 = memref.load %arg2[%3, %c0] : memref<3x4xf32, #tpu.memory_space<smem>>
    %5 = arith.index_cast %arg0 : i32 to index
    %c1 = arith.constant 1 : index
    %6 = memref.load %arg2[%5, %c1] : memref<3x4xf32, #tpu.memory_space<smem>>
    %7 = arith.index_cast %arg0 : i32 to index
    %c2 = arith.constant 2 : index
    %8 = memref.load %arg2[%7, %c2] : memref<3x4xf32, #tpu.memory_space<smem>>
    %9 = arith.index_cast %arg0 : i32 to index
    %c3 = arith.constant 3 : index
    %10 = memref.load %arg2[%9, %c3] : memref<3x4xf32, #tpu.memory_space<smem>>
    %11 = tpu.iota {dimensions = array<i32: 0>} : vector<8x128xi32>
    %c128_i32 = arith.constant 128 : i32
    %12 = vector.broadcast %c128_i32 : i32 to vector<8x128xi32>
    %13 = arith.muli %11, %12 : vector<8x128xi32>
    %14 = tpu.iota {dimensions = array<i32: 1>} : vector<8x128xi32>
    %15 = arith.addi %13, %14 : vector<8x128xi32>
    %c1024_i32 = arith.constant 1024 : i32
    %16 = arith.muli %arg1, %c1024_i32 : i32
    %cst = arith.constant 0.000000e+00 : f32
    %17 = vector.broadcast %cst : f32 to vector<8x128xf32>
    %c0_i32_1 = arith.constant 0 : i32
    %c8_i32 = arith.constant 8 : i32
    %18 = arith.muli %c0_i32_1, %c8_i32 : i32
    %19 = tpu.assume_multiple %18, 8 : i32
    %c128_i32_2 = arith.constant 128 : i32
    %20 = arith.muli %19, %c128_i32_2 : i32
    %21 = arith.addi %16, %20 : i32
    %22 = vector.broadcast %21 : i32 to vector<8x128xi32>
    %23 = arith.addi %15, %22 : vector<8x128xi32>
    %c128_i32_3 = arith.constant 128 : i32
    %24 = vector.broadcast %c128_i32_3 : i32 to vector<8x128xi32>
    %25 = arith.cmpi slt, %23, %24 : vector<8x128xi32>
    %c0_4 = arith.constant 0 : index
    %c0_5 = arith.constant 0 : index
    %26 = arith.index_cast %19 : i32 to index
    %c0_6 = arith.constant 0 : index
    %27 = vector.load %arg4[%c0_4, %c0_5, %26, %c0_6] : memref<6x1x8x128xf32, #tpu.memory_space<vmem>>, vector<1x1x8x128xf32>
    %28 = vector.shape_cast %27 : vector<1x1x8x128xf32> to vector<8x128xf32>
    %cst_7 = arith.constant 1.000000e+00 : f32
    %29 = vector.broadcast %cst_7 : f32 to vector<8x128xf32>
    %30 = arith.cmpf oeq, %28, %29 : vector<8x128xf32>
    %31 = arith.andi %25, %30 : vector<8x128xi1>
    %cst_8 = arith.constant 0.000000e+00 : f32
    %32 = vector.broadcast %cst_8 : f32 to vector<8x128xf32>
    %33 = arith.cmpf oeq, %28, %32 : vector<8x128xf32>
    %34 = arith.andi %25, %33 : vector<8x128xi1>
    %c0_9 = arith.constant 0 : index
    %c0_10 = arith.constant 0 : index
    %35 = arith.index_cast %19 : i32 to index
    %c0_11 = arith.constant 0 : index
    %36 = vector.load %arg3[%c0_9, %c0_10, %35, %c0_11] : memref<9x1x8x128xf32, #tpu.memory_space<vmem>>, vector<1x1x8x128xf32>
    %37 = vector.shape_cast %36 : vector<1x1x8x128xf32> to vector<8x128xf32>
    %38 = math.absf %37 : vector<8x128xf32>
    %cst_12 = arith.constant 0.000000e+00 : f32
    %39 = vector.broadcast %cst_12 : f32 to vector<8x128xf32>
    %40 = arith.subf %39, %38 : vector<8x128xf32>
    %41 = math.exp %40 : vector<8x128xf32>
    %cst_13 = arith.constant 0.000000e+00 : f32
    %42 = vector.broadcast %cst_13 : f32 to vector<8x128xf32>
    %43 = arith.maximumf %37, %42 : vector<8x128xf32>
    %44 = arith.mulf %37, %28 : vector<8x128xf32>
    %45 = arith.subf %43, %44 : vector<8x128xf32>
    %46 = math.log1p %41 : vector<8x128xf32>
    %47 = arith.addf %45, %46 : vector<8x128xf32>
    %cst_14 = arith.constant 1.000000e+00 : f32
    %48 = vector.broadcast %cst_14 : f32 to vector<8x128xf32>
    %49 = arith.addf %48, %41 : vector<8x128xf32>
    %50 = tpu.reciprocal %49 {approx = true} : vector<8x128xf32> -> vector<8x128xf32>
    %cst_15 = arith.constant 0.000000e+00 : f32
    %51 = vector.broadcast %cst_15 : f32 to vector<8x128xf32>
    %52 = arith.cmpf oge, %37, %51 : vector<8x128xf32>
    %53 = arith.mulf %41, %50 : vector<8x128xf32>
    %54 = arith.select %52, %50, %53 : vector<8x128xi1>, vector<8x128xf32>
    %c1_16 = arith.constant 1 : index
    %c0_17 = arith.constant 0 : index
    %55 = arith.index_cast %19 : i32 to index
    %c0_18 = arith.constant 0 : index
    %56 = vector.load %arg3[%c1_16, %c0_17, %55, %c0_18] : memref<9x1x8x128xf32, #tpu.memory_space<vmem>>, vector<1x1x8x128xf32>
    %57 = vector.shape_cast %56 : vector<1x1x8x128xf32> to vector<8x128xf32>
    %58 = arith.negf %57 : vector<8x128xf32>
    %59 = math.exp %58 : vector<8x128xf32>
    %cst_19 = arith.constant 1.000000e+00 : f32
    %60 = vector.broadcast %cst_19 : f32 to vector<8x128xf32>
    %61 = arith.addf %60, %59 : vector<8x128xf32>
    %62 = arith.divf %60, %61 : vector<8x128xf32>
    %c2_20 = arith.constant 2 : index
    %c0_21 = arith.constant 0 : index
    %63 = arith.index_cast %19 : i32 to index
    %c0_22 = arith.constant 0 : index
    %64 = vector.load %arg3[%c2_20, %c0_21, %63, %c0_22] : memref<9x1x8x128xf32, #tpu.memory_space<vmem>>, vector<1x1x8x128xf32>
    %65 = vector.shape_cast %64 : vector<1x1x8x128xf32> to vector<8x128xf32>
    %66 = arith.negf %65 : vector<8x128xf32>
    %67 = math.exp %66 : vector<8x128xf32>
    %cst_23 = arith.constant 1.000000e+00 : f32
    %68 = vector.broadcast %cst_23 : f32 to vector<8x128xf32>
    %69 = arith.addf %68, %67 : vector<8x128xf32>
    %70 = arith.divf %68, %69 : vector<8x128xf32>
    %c3_24 = arith.constant 3 : index
    %c0_25 = arith.constant 0 : index
    %71 = arith.index_cast %19 : i32 to index
    %c0_26 = arith.constant 0 : index
    %72 = vector.load %arg3[%c3_24, %c0_25, %71, %c0_26] : memref<9x1x8x128xf32, #tpu.memory_space<vmem>>, vector<1x1x8x128xf32>
    %73 = vector.shape_cast %72 : vector<1x1x8x128xf32> to vector<8x128xf32>
    %c4 = arith.constant 4 : index
    %c0_27 = arith.constant 0 : index
    %74 = arith.index_cast %19 : i32 to index
    %c0_28 = arith.constant 0 : index
    %75 = vector.load %arg3[%c4, %c0_27, %74, %c0_28] : memref<9x1x8x128xf32, #tpu.memory_space<vmem>>, vector<1x1x8x128xf32>
    %76 = vector.shape_cast %75 : vector<1x1x8x128xf32> to vector<8x128xf32>
    %77 = math.exp %73 : vector<8x128xf32>
    %78 = vector.broadcast %4 : f32 to vector<8x128xf32>
    %79 = arith.mulf %77, %78 : vector<8x128xf32>
    %80 = math.exp %76 : vector<8x128xf32>
    %81 = vector.broadcast %6 : f32 to vector<8x128xf32>
    %82 = arith.mulf %80, %81 : vector<8x128xf32>
    %c1_29 = arith.constant 1 : index
    %c0_30 = arith.constant 0 : index
    %83 = arith.index_cast %19 : i32 to index
    %c0_31 = arith.constant 0 : index
    %84 = vector.load %arg4[%c1_29, %c0_30, %83, %c0_31] : memref<6x1x8x128xf32, #tpu.memory_space<vmem>>, vector<1x1x8x128xf32>
    %85 = vector.shape_cast %84 : vector<1x1x8x128xf32> to vector<8x128xf32>
    %c2_32 = arith.constant 2 : index
    %c0_33 = arith.constant 0 : index
    %86 = arith.index_cast %19 : i32 to index
    %c0_34 = arith.constant 0 : index
    %87 = vector.load %arg4[%c2_32, %c0_33, %86, %c0_34] : memref<6x1x8x128xf32, #tpu.memory_space<vmem>>, vector<1x1x8x128xf32>
    %88 = vector.shape_cast %87 : vector<1x1x8x128xf32> to vector<8x128xf32>
    %c3_35 = arith.constant 3 : index
    %c0_36 = arith.constant 0 : index
    %89 = arith.index_cast %19 : i32 to index
    %c0_37 = arith.constant 0 : index
    %90 = vector.load %arg4[%c3_35, %c0_36, %89, %c0_37] : memref<6x1x8x128xf32, #tpu.memory_space<vmem>>, vector<1x1x8x128xf32>
    %91 = vector.shape_cast %90 : vector<1x1x8x128xf32> to vector<8x128xf32>
    %c4_38 = arith.constant 4 : index
    %c0_39 = arith.constant 0 : index
    %92 = arith.index_cast %19 : i32 to index
    %c0_40 = arith.constant 0 : index
    %93 = vector.load %arg4[%c4_38, %c0_39, %92, %c0_40] : memref<6x1x8x128xf32, #tpu.memory_space<vmem>>, vector<1x1x8x128xf32>
    %94 = vector.shape_cast %93 : vector<1x1x8x128xf32> to vector<8x128xf32>
    %cst_41 = arith.constant 5.000000e-01 : f32
    %95 = vector.broadcast %cst_41 : f32 to vector<8x128xf32>
    %96 = arith.mulf %95, %79 : vector<8x128xf32>
    %97 = arith.addf %62, %96 : vector<8x128xf32>
    %cst_42 = arith.constant 5.000000e-01 : f32
    %98 = vector.broadcast %cst_42 : f32 to vector<8x128xf32>
    %99 = arith.mulf %98, %91 : vector<8x128xf32>
    %100 = arith.addf %85, %99 : vector<8x128xf32>
    %101 = arith.minimumf %97, %100 : vector<8x128xf32>
    %cst_43 = arith.constant 5.000000e-01 : f32
    %102 = vector.broadcast %cst_43 : f32 to vector<8x128xf32>
    %103 = arith.mulf %102, %79 : vector<8x128xf32>
    %104 = arith.subf %62, %103 : vector<8x128xf32>
    %cst_44 = arith.constant 5.000000e-01 : f32
    %105 = vector.broadcast %cst_44 : f32 to vector<8x128xf32>
    %106 = arith.mulf %105, %91 : vector<8x128xf32>
    %107 = arith.subf %85, %106 : vector<8x128xf32>
    %108 = arith.maximumf %104, %107 : vector<8x128xf32>
    %109 = arith.subf %101, %108 : vector<8x128xf32>
    %cst_45 = arith.constant 0.000000e+00 : f32
    %110 = vector.broadcast %cst_45 : f32 to vector<8x128xf32>
    %111 = arith.maximumf %109, %110 : vector<8x128xf32>
    %cst_46 = arith.constant 5.000000e-01 : f32
    %112 = vector.broadcast %cst_46 : f32 to vector<8x128xf32>
    %113 = arith.mulf %112, %82 : vector<8x128xf32>
    %114 = arith.addf %70, %113 : vector<8x128xf32>
    %cst_47 = arith.constant 5.000000e-01 : f32
    %115 = vector.broadcast %cst_47 : f32 to vector<8x128xf32>
    %116 = arith.mulf %115, %94 : vector<8x128xf32>
    %117 = arith.addf %88, %116 : vector<8x128xf32>
    %118 = arith.minimumf %114, %117 : vector<8x128xf32>
    %cst_48 = arith.constant 5.000000e-01 : f32
    %119 = vector.broadcast %cst_48 : f32 to vector<8x128xf32>
    %120 = arith.mulf %119, %82 : vector<8x128xf32>
    %121 = arith.subf %70, %120 : vector<8x128xf32>
    %cst_49 = arith.constant 5.000000e-01 : f32
    %122 = vector.broadcast %cst_49 : f32 to vector<8x128xf32>
    %123 = arith.mulf %122, %94 : vector<8x128xf32>
    %124 = arith.subf %88, %123 : vector<8x128xf32>
    %125 = arith.maximumf %121, %124 : vector<8x128xf32>
    %126 = arith.subf %118, %125 : vector<8x128xf32>
    %cst_50 = arith.constant 0.000000e+00 : f32
    %127 = vector.broadcast %cst_50 : f32 to vector<8x128xf32>
    %128 = arith.maximumf %126, %127 : vector<8x128xf32>
    %129 = arith.mulf %111, %128 : vector<8x128xf32>
    %130 = arith.mulf %79, %82 : vector<8x128xf32>
    %131 = math.absf %130 : vector<8x128xf32>
    %132 = arith.mulf %91, %94 : vector<8x128xf32>
    %133 = math.absf %132 : vector<8x128xf32>
    %134 = arith.addf %131, %133 : vector<8x128xf32>
    %135 = arith.subf %134, %129 : vector<8x128xf32>
    %cst_51 = arith.constant 9.99999997E-7 : f32
    %136 = vector.broadcast %cst_51 : f32 to vector<8x128xf32>
    %137 = arith.addf %135, %136 : vector<8x128xf32>
    %138 = tpu.reciprocal %137 {approx = true} : vector<8x128xf32> -> vector<8x128xf32>
    %139 = arith.mulf %129, %138 : vector<8x128xf32>
    %140 = arith.mulf %139, %28 : vector<8x128xf32>
    %141 = arith.subf %54, %140 : vector<8x128xf32>
    %142 = arith.mulf %141, %141 : vector<8x128xf32>
    %143 = vector.broadcast %8 : f32 to vector<8x128xf32>
    %144 = arith.mulf %91, %143 : vector<8x128xf32>
    %cst_52 = arith.constant 9.99999997E-7 : f32
    %145 = vector.broadcast %cst_52 : f32 to vector<8x128xf32>
    %146 = arith.addf %145, %144 : vector<8x128xf32>
    %147 = math.log %146 : vector<8x128xf32>
    %148 = vector.broadcast %10 : f32 to vector<8x128xf32>
    %149 = arith.mulf %94, %148 : vector<8x128xf32>
    %cst_53 = arith.constant 9.99999997E-7 : f32
    %150 = vector.broadcast %cst_53 : f32 to vector<8x128xf32>
    %151 = arith.addf %150, %149 : vector<8x128xf32>
    %152 = math.log %151 : vector<8x128xf32>
    %153 = arith.subf %62, %85 : vector<8x128xf32>
    %154 = arith.mulf %153, %153 : vector<8x128xf32>
    %155 = arith.subf %70, %88 : vector<8x128xf32>
    %156 = arith.mulf %155, %155 : vector<8x128xf32>
    %157 = arith.addf %154, %156 : vector<8x128xf32>
    %158 = arith.subf %73, %147 : vector<8x128xf32>
    %159 = arith.mulf %158, %158 : vector<8x128xf32>
    %160 = arith.addf %157, %159 : vector<8x128xf32>
    %161 = arith.subf %76, %152 : vector<8x128xf32>
    %162 = arith.mulf %161, %161 : vector<8x128xf32>
    %163 = arith.addf %160, %162 : vector<8x128xf32>
    %c5 = arith.constant 5 : index
    %c0_54 = arith.constant 0 : index
    %164 = arith.index_cast %19 : i32 to index
    %c0_55 = arith.constant 0 : index
    %165 = vector.load %arg4[%c5, %c0_54, %164, %c0_55] : memref<6x1x8x128xf32, #tpu.memory_space<vmem>>, vector<1x1x8x128xf32>
    %166 = vector.shape_cast %165 : vector<1x1x8x128xf32> to vector<8x128xf32>
    %c5_56 = arith.constant 5 : index
    %c0_57 = arith.constant 0 : index
    %167 = arith.index_cast %19 : i32 to index
    %c0_58 = arith.constant 0 : index
    %168 = vector.load %arg3[%c5_56, %c0_57, %167, %c0_58] : memref<9x1x8x128xf32, #tpu.memory_space<vmem>>, vector<1x1x8x128xf32>
    %169 = vector.shape_cast %168 : vector<1x1x8x128xf32> to vector<8x128xf32>
    %c6 = arith.constant 6 : index
    %c0_59 = arith.constant 0 : index
    %170 = arith.index_cast %19 : i32 to index
    %c0_60 = arith.constant 0 : index
    %171 = vector.load %arg3[%c6, %c0_59, %170, %c0_60] : memref<9x1x8x128xf32, #tpu.memory_space<vmem>>, vector<1x1x8x128xf32>
    %172 = vector.shape_cast %171 : vector<1x1x8x128xf32> to vector<8x128xf32>
    %173 = arith.maximumf %169, %172 : vector<8x128xf32>
    %c7 = arith.constant 7 : index
    %c0_61 = arith.constant 0 : index
    %174 = arith.index_cast %19 : i32 to index
    %c0_62 = arith.constant 0 : index
    %175 = vector.load %arg3[%c7, %c0_61, %174, %c0_62] : memref<9x1x8x128xf32, #tpu.memory_space<vmem>>, vector<1x1x8x128xf32>
    %176 = vector.shape_cast %175 : vector<1x1x8x128xf32> to vector<8x128xf32>
    %177 = arith.maximumf %173, %176 : vector<8x128xf32>
    %c8 = arith.constant 8 : index
    %c0_63 = arith.constant 0 : index
    %178 = arith.index_cast %19 : i32 to index
    %c0_64 = arith.constant 0 : index
    %179 = vector.load %arg3[%c8, %c0_63, %178, %c0_64] : memref<9x1x8x128xf32, #tpu.memory_space<vmem>>, vector<1x1x8x128xf32>
    %180 = vector.shape_cast %179 : vector<1x1x8x128xf32> to vector<8x128xf32>
    %181 = arith.maximumf %177, %180 : vector<8x128xf32>
    %cst_65 = arith.constant 0.000000e+00 : f32
    %182 = vector.broadcast %cst_65 : f32 to vector<8x128xf32>
    %cst_66 = arith.constant 0.000000e+00 : f32
    %183 = vector.broadcast %cst_66 : f32 to vector<8x128xf32>
    %c5_67 = arith.constant 5 : index
    %c0_68 = arith.constant 0 : index
    %184 = arith.index_cast %19 : i32 to index
    %c0_69 = arith.constant 0 : index
    %185 = vector.load %arg3[%c5_67, %c0_68, %184, %c0_69] : memref<9x1x8x128xf32, #tpu.memory_space<vmem>>, vector<1x1x8x128xf32>
    %186 = vector.shape_cast %185 : vector<1x1x8x128xf32> to vector<8x128xf32>
    %187 = arith.subf %186, %181 : vector<8x128xf32>
    %188 = math.exp %187 : vector<8x128xf32>
    %189 = arith.addf %182, %188 : vector<8x128xf32>
    %cst_70 = arith.constant 0.000000e+00 : f32
    %190 = vector.broadcast %cst_70 : f32 to vector<8x128xf32>
    %191 = arith.cmpf oeq, %166, %190 : vector<8x128xf32>
    %cst_71 = arith.constant 0.000000e+00 : f32
    %192 = vector.broadcast %cst_71 : f32 to vector<8x128xf32>
    %193 = arith.select %191, %186, %192 : vector<8x128xi1>, vector<8x128xf32>
    %194 = arith.addf %183, %193 : vector<8x128xf32>
    %c6_72 = arith.constant 6 : index
    %c0_73 = arith.constant 0 : index
    %195 = arith.index_cast %19 : i32 to index
    %c0_74 = arith.constant 0 : index
    %196 = vector.load %arg3[%c6_72, %c0_73, %195, %c0_74] : memref<9x1x8x128xf32, #tpu.memory_space<vmem>>, vector<1x1x8x128xf32>
    %197 = vector.shape_cast %196 : vector<1x1x8x128xf32> to vector<8x128xf32>
    %198 = arith.subf %197, %181 : vector<8x128xf32>
    %199 = math.exp %198 : vector<8x128xf32>
    %200 = arith.addf %189, %199 : vector<8x128xf32>
    %cst_75 = arith.constant 1.000000e+00 : f32
    %201 = vector.broadcast %cst_75 : f32 to vector<8x128xf32>
    %202 = arith.cmpf oeq, %166, %201 : vector<8x128xf32>
    %cst_76 = arith.constant 0.000000e+00 : f32
    %203 = vector.broadcast %cst_76 : f32 to vector<8x128xf32>
    %204 = arith.select %202, %197, %203 : vector<8x128xi1>, vector<8x128xf32>
    %205 = arith.addf %194, %204 : vector<8x128xf32>
    %c7_77 = arith.constant 7 : index
    %c0_78 = arith.constant 0 : index
    %206 = arith.index_cast %19 : i32 to index
    %c0_79 = arith.constant 0 : index
    %207 = vector.load %arg3[%c7_77, %c0_78, %206, %c0_79] : memref<9x1x8x128xf32, #tpu.memory_space<vmem>>, vector<1x1x8x128xf32>
    %208 = vector.shape_cast %207 : vector<1x1x8x128xf32> to vector<8x128xf32>
    %209 = arith.subf %208, %181 : vector<8x128xf32>
    %210 = math.exp %209 : vector<8x128xf32>
    %211 = arith.addf %200, %210 : vector<8x128xf32>
    %cst_80 = arith.constant 2.000000e+00 : f32
    %212 = vector.broadcast %cst_80 : f32 to vector<8x128xf32>
    %213 = arith.cmpf oeq, %166, %212 : vector<8x128xf32>
    %cst_81 = arith.constant 0.000000e+00 : f32
    %214 = vector.broadcast %cst_81 : f32 to vector<8x128xf32>
    %215 = arith.select %213, %208, %214 : vector<8x128xi1>, vector<8x128xf32>
    %216 = arith.addf %205, %215 : vector<8x128xf32>
    %c8_82 = arith.constant 8 : index
    %c0_83 = arith.constant 0 : index
    %217 = arith.index_cast %19 : i32 to index
    %c0_84 = arith.constant 0 : index
    %218 = vector.load %arg3[%c8_82, %c0_83, %217, %c0_84] : memref<9x1x8x128xf32, #tpu.memory_space<vmem>>, vector<1x1x8x128xf32>
    %219 = vector.shape_cast %218 : vector<1x1x8x128xf32> to vector<8x128xf32>
    %220 = arith.subf %219, %181 : vector<8x128xf32>
    %221 = math.exp %220 : vector<8x128xf32>
    %222 = arith.addf %211, %221 : vector<8x128xf32>
    %cst_85 = arith.constant 3.000000e+00 : f32
    %223 = vector.broadcast %cst_85 : f32 to vector<8x128xf32>
    %224 = arith.cmpf oeq, %166, %223 : vector<8x128xf32>
    %cst_86 = arith.constant 0.000000e+00 : f32
    %225 = vector.broadcast %cst_86 : f32 to vector<8x128xf32>
    %226 = arith.select %224, %219, %225 : vector<8x128xi1>, vector<8x128xf32>
    %227 = arith.addf %216, %226 : vector<8x128xf32>
    %228 = math.log %222 : vector<8x128xf32>
    %229 = arith.addf %181, %228 : vector<8x128xf32>
    %230 = arith.subf %229, %227 : vector<8x128xf32>
    %cst_87 = arith.constant 1.000000e+00 : f32
    %231 = vector.broadcast %cst_87 : f32 to vector<8x128xf32>
    %cst_88 = arith.constant 0.000000e+00 : f32
    %232 = vector.broadcast %cst_88 : f32 to vector<8x128xf32>
    %233 = arith.select %34, %47, %232 : vector<8x128xi1>, vector<8x128xf32>
    %234 = arith.addf %17, %233 : vector<8x128xf32>
    %235 = arith.select %34, %231, %232 : vector<8x128xi1>, vector<8x128xf32>
    %236 = arith.addf %17, %235 : vector<8x128xf32>
    %cst_89 = arith.constant 2.500000e-01 : f32
    %237 = vector.broadcast %cst_89 : f32 to vector<8x128xf32>
    %238 = arith.mulf %237, %163 : vector<8x128xf32>
    %239 = arith.addf %142, %238 : vector<8x128xf32>
    %240 = arith.addf %239, %230 : vector<8x128xf32>
    %241 = arith.select %31, %240, %232 : vector<8x128xi1>, vector<8x128xf32>
    %242 = arith.addf %17, %241 : vector<8x128xf32>
    %243 = arith.select %31, %231, %232 : vector<8x128xi1>, vector<8x128xf32>
    %244 = arith.addf %17, %243 : vector<8x128xf32>
    %c1_i32 = arith.constant 1 : i32
    %c0_90 = arith.constant 0 : index
    %c0_91 = arith.constant 0 : index
    %245 = vector.load %arg5[%c0_90, %c0_91] : memref<32x128xf32, #tpu.memory_space<vmem>>, vector<8x128xf32>
    %246 = arith.addf %245, %234 : vector<8x128xf32>
    %c0_92 = arith.constant 0 : index
    %c0_93 = arith.constant 0 : index
    %247 = vector.load %arg5[%c0_92, %c0_93] : memref<32x128xf32, #tpu.memory_space<vmem>>, vector<8x128xf32>
    tpu.vector_store %arg5[%c0_92, %c0_93], %246 {strides = array<i32>} : memref<32x128xf32, #tpu.memory_space<vmem>>, vector<8x128xf32>,
    %c8_94 = arith.constant 8 : index
    %c0_95 = arith.constant 0 : index
    %248 = vector.load %arg5[%c8_94, %c0_95] : memref<32x128xf32, #tpu.memory_space<vmem>>, vector<8x128xf32>
    %249 = arith.addf %248, %236 : vector<8x128xf32>
    %c8_96 = arith.constant 8 : index
    %c0_97 = arith.constant 0 : index
    %250 = vector.load %arg5[%c8_96, %c0_97] : memref<32x128xf32, #tpu.memory_space<vmem>>, vector<8x128xf32>
    tpu.vector_store %arg5[%c8_96, %c0_97], %249 {strides = array<i32>} : memref<32x128xf32, #tpu.memory_space<vmem>>, vector<8x128xf32>,
    %c16 = arith.constant 16 : index
    %c0_98 = arith.constant 0 : index
    %251 = vector.load %arg5[%c16, %c0_98] : memref<32x128xf32, #tpu.memory_space<vmem>>, vector<8x128xf32>
    %252 = arith.addf %251, %242 : vector<8x128xf32>
    %c16_99 = arith.constant 16 : index
    %c0_100 = arith.constant 0 : index
    %253 = vector.load %arg5[%c16_99, %c0_100] : memref<32x128xf32, #tpu.memory_space<vmem>>, vector<8x128xf32>
    tpu.vector_store %arg5[%c16_99, %c0_100], %252 {strides = array<i32>} : memref<32x128xf32, #tpu.memory_space<vmem>>, vector<8x128xf32>,
    %c24 = arith.constant 24 : index
    %c0_101 = arith.constant 0 : index
    %254 = vector.load %arg5[%c24, %c0_101] : memref<32x128xf32, #tpu.memory_space<vmem>>, vector<8x128xf32>
    %255 = arith.addf %254, %244 : vector<8x128xf32>
    %c24_102 = arith.constant 24 : index
    %c0_103 = arith.constant 0 : index
    %256 = vector.load %arg5[%c24_102, %c0_103] : memref<32x128xf32, #tpu.memory_space<vmem>>, vector<8x128xf32>
    tpu.vector_store %arg5[%c24_102, %c0_103], %255 {strides = array<i32>} : memref<32x128xf32, #tpu.memory_space<vmem>>, vector<8x128xf32>,
    return
  }
  func.func @transform_0(%arg0: i32, %arg1: i32) -> (i32, i32) {
    %c0_i32 = arith.constant 0 : i32
    %c0_i32_0 = arith.constant 0 : i32
    %c0_i32_1 = arith.constant 0 : i32
    return %c0_i32, %c0_i32_0 : i32, i32
  }
  func.func @transform_1(%arg0: i32, %arg1: i32) -> (i32, i32, i32, i32) {
    %c0_i32 = arith.constant 0 : i32
    %c0_i32_0 = arith.constant 0 : i32
    %c0_i32_1 = arith.constant 0 : i32
    return %c0_i32, %arg0, %arg1, %c0_i32_0 : i32, i32, i32, i32
  }
  func.func @transform_2(%arg0: i32, %arg1: i32) -> (i32, i32, i32, i32) {
    %c0_i32 = arith.constant 0 : i32
    %c0_i32_0 = arith.constant 0 : i32
    %c0_i32_1 = arith.constant 0 : i32
    return %c0_i32, %arg0, %arg1, %c0_i32_0 : i32, i32, i32, i32
  }
  func.func @transform_3(%arg0: i32, %arg1: i32) -> (i32, i32) {
    %c0_i32 = arith.constant 0 : i32
    %c0_i32_0 = arith.constant 0 : i32
    return %c0_i32, %arg0 : i32, i32
  }
}

</mosaic_0001>

<llo_original>
// kernel: yolo_loss_pallas.1
$region0: #{yolo_loss_pallas.1}
  #allocation0 [shape = 'u32[]', space=smem, size = 0x4, offset = 0x4, fixed_abs, tag = 'smem constant byte address 0x4 - core index']
  #allocation1 [shape = 'u32[144,128]{1,0:T(1,128)}', space=vmem, size = 0x12000, scoped, tag = 'internal scratch']
  %s0 = inlined_call_operand.vmem [shape: f32[3,4], index: 0, kind: input, shape index: {}]
  %s1 = inlined_call_operand.vmem [shape: f32[9,3,8,128], index: 1, kind: input, shape index: {}]
  %s2 = inlined_call_operand.vmem [shape: f32[6,3,8,128], index: 2, kind: input, shape index: {}]
  %s3 = inlined_call_operand.vmem [shape: f32[32,384], index: 3, kind: output, shape index: {}]
  %s4 = sld [smem:[#allocation0]]
  $region163: #{yolo_loss_pallas.1} parent=0
    _
  %s6 = ssub.s32 1, %s4
  %s7 = scalar_select 0, %s6, %s4
  $region1: #{yolo_loss_pallas.1} parent=0
    #allocation2 [shape = 'u8[2048]{0}', space=smem, size = 0x800, scoped, tag = 'input window, operand 0, single buffered']
    #allocation3 [shape = 's32[2]{0}', space=sflag, size = 0x8, scoped, tag = 'scoped memory for yolo_loss_pallas.1']
    #allocation4 [shape = 'u8[73728]{0}', space=vmem, size = 0x12000, scoped, tag = 'input window, operand 1']
    #allocation5 [shape = 'u8[49152]{0}', space=vmem, size = 0xc000, scoped, tag = 'input window, operand 2']
    #allocation6 [shape = 'u8[32768]{0}', space=vmem, size = 0x8000, scoped, tag = 'output window, operand 0']
    %8 = vsyncpa [#allocation3], 0
    loop: start=0, step=1, limit=5
    $region2: #{yolo_loss_pallas.1} parent=1 // loop_pre_header
      _
    $region3: #{yolo_loss_pallas.1} parent=1 // loop_header
      %s10 = sphi 0, %s14
      %p11 = scmp.ge.s32.totalorder %s10, 5
      %s17 = sphi 0, %s29
      %s18 = sphi 0, %s25
      %s19 = sphi 0, %s17
      %s20 = sphi 0, %s18
      %s21 = sphi 0, %s19
      %s22 = sphi 0, %s20
      %s30 = sphi 0, %s30
      %s32 = sphi 0, %s30
      %s33 = sphi 0, %s32
      %s47 = sphi 0, %s33
      %s55 = sphi 0, %s57
      %s58 = sphi 0, %s55
      %s59 = sphi 0, %s58
      %s75 = sphi 0, %s59
      %s83 = sphi 0, %s85
      %s86 = sphi 0, %s83
      %s87 = sphi 0, %s86
      %s103 = sphi 0, %s87
      %s109 = sphi 0, %s111
      %s112 = sphi 0, %s109
      %s113 = sphi 0, %s112
      %s129 = sphi 0, %s113
    $region4: #{yolo_loss_pallas.1} parent=1 // loop_header_branch
      %13 = sbr.rel (%p11) target = $region8
    $region5: #{yolo_loss_pallas.1} parent=1 // loop_body
      %s15 = ssub.s32 %s10, 1
      %s16 = ssub.s32 %s10, 2
      %s23 = sadd.s32 1, %s18
      %p24 = scmp.ge.s32.totalorder %s23, 1
      %s25 = scalar_select %p24, 0, %s23
      %s26 = sadd.s32 1, %s17
      %s27 = scalar_select %p24, %s26, %s17
      %p28 = scmp.ge.s32.totalorder %s27, 3
      %s29 = scalar_select %p28, 0, %s27
      %s31 = sadd.s32 %s30, 1
      %p34 = scmp.eq.s32.totalorder %s10, 2
      %p35 = scmp.ne.s32.totalorder %s30, %s32
      %p36 = scmp.eq.s32.totalorder %s10, 0
      %p37 = por %p35, %p36
      %p38 = scmp.ne.s32.totalorder %s30, %s32
      %p39 = scmp.eq.s32.totalorder %s15, 2
      %p40 = por %p38, %p39
      %p41 = scmp.ne.s32.totalorder %s32, %s33
      %p42 = scmp.eq.s32.totalorder %s15, 0
      %p43 = por %p41, %p42
      %p44 = scmp.ne.s32.totalorder %s32, %s33
      %p45 = scmp.eq.s32.totalorder %s16, 2
      %p46 = por %p44, %p45
      %p48 = scmp.ne.s32.totalorder %s33, %s47
      %p49 = scmp.eq.s32.totalorder %s16, 0
      %p50 = por %p48, %p49
      %s51 = ssub.s32 %s17, %s29
      %s52 = ssub.s32 %s18, %s25
      %s53 = sor.u32 %s51, %s52
      %p54 = scmp.eq.s32.totalorder %s53, 0
      %s56 = sadd.s32 %s55, 1
      %s57 = scalar_select %p54, %s55, %s56
      %p60 = pneg %p54
      %p61 = scmp.eq.s32.totalorder %s10, 2
      %p62 = por %p60, %p61
      %p63 = scmp.ne.s32.totalorder %s55, %s58
      %p64 = scmp.eq.s32.totalorder %s10, 0
      %p65 = por %p63, %p64
      %p66 = scmp.ne.s32.totalorder %s55, %s58
      %p67 = scmp.eq.s32.totalorder %s15, 2
      %p68 = por %p66, %p67
      %p69 = scmp.ne.s32.totalorder %s58, %s59
      %p70 = scmp.eq.s32.totalorder %s15, 0
      %p71 = por %p69, %p70
      %p72 = scmp.ne.s32.totalorder %s58, %s59
      %p73 = scmp.eq.s32.totalorder %s16, 2
      %p74 = por %p72, %p73
      %p76 = scmp.ne.s32.totalorder %s59, %s75
      %p77 = scmp.eq.s32.totalorder %s16, 0
      %p78 = por %p76, %p77
      %s79 = ssub.s32 %s17, %s29
      %s80 = ssub.s32 %s18, %s25
      %s81 = sor.u32 %s79, %s80
      %p82 = scmp.eq.s32.totalorder %s81, 0
      %s84 = sadd.s32 %s83, 1
      %s85 = scalar_select %p82, %s83, %s84
      %p88 = pneg %p82
      %p89 = scmp.eq.s32.totalorder %s10, 2
      %p90 = por %p88, %p89
      %p91 = scmp.ne.s32.totalorder %s83, %s86
      %p92 = scmp.eq.s32.totalorder %s10, 0
      %p93 = por %p91, %p92
      %p94 = scmp.ne.s32.totalorder %s83, %s86
      %p95 = scmp.eq.s32.totalorder %s15, 2
      %p96 = por %p94, %p95
      %p97 = scmp.ne.s32.totalorder %s86, %s87
      %p98 = scmp.eq.s32.totalorder %s15, 0
      %p99 = por %p97, %p98
      %p100 = scmp.ne.s32.totalorder %s86, %s87
      %p101 = scmp.eq.s32.totalorder %s16, 2
      %p102 = por %p100, %p101
      %p104 = scmp.ne.s32.totalorder %s87, %s103
      %p105 = scmp.eq.s32.totalorder %s16, 0
      %p106 = por %p104, %p105
      %s107 = ssub.s32 %s17, %s29
      %p108 = scmp.eq.s32.totalorder %s107, 0
      %s110 = sadd.s32 %s109, 1
      %s111 = scalar_select %p108, %s109, %s110
      %p114 = pneg %p108
      %p115 = scmp.eq.s32.totalorder %s10, 2
      %p116 = por %p114, %p115
      %p117 = scmp.ne.s32.totalorder %s109, %s112
      %p118 = scmp.eq.s32.totalorder %s10, 0
      %p119 = por %p117, %p118
      %p120 = scmp.ne.s32.totalorder %s109, %s112
      %p121 = scmp.eq.s32.totalorder %s15, 2
      %p122 = por %p120, %p121
      %p123 = scmp.ne.s32.totalorder %s112, %s113
      %p124 = scmp.eq.s32.totalorder %s15, 0
      %p125 = por %p123, %p124
      %p126 = scmp.ne.s32.totalorder %s112, %s113
      %p127 = scmp.eq.s32.totalorder %s16, 2
      %p128 = por %p126, %p127
      %p130 = scmp.ne.s32.totalorder %s113, %s129
      %p131 = scmp.eq.s32.totalorder %s16, 0
      %p132 = por %p130, %p131
      %p133 = scmp.le.s32.totalorder 1, %s10
      %p134 = scmp.lt.s32.totalorder %s10, 4
      %p135 = pnand %p133, %p134
      %p136 = pneg %p135
      // Predicated region
      $region9: #{yolo_loss_pallas.1} parent=5 // pred_check
        _
      $region10: #{yolo_loss_pallas.1} parent=5 // pred_check_branch
        %138 = sbr.rel (%p135) target = $region12
      $region11: #{yolo_loss_pallas.1} parent=5 // pred_region
        %s139 = ssub.s32 %s10, 1
        // Predicated region
        $region13: #{yolo_loss_pallas.1} parent=11 // pred_check
          %p140 = pneg %p43
        $region14: #{yolo_loss_pallas.1} parent=11 // pred_check_branch
          %142 = sbr.rel (%p140) target = $region16
        $region15: #{yolo_loss_pallas.1} parent=11 // pred_region
          %s144 = ssub.s32 64, 64
          %145 = vsyncadd [#allocation3], %s144
          %s147 = sshll.u32 %s0, 4
          %s148 = int_to_ptr.vmem [resolvable:$true] %s147
          %150 = dma.vmem_to_smem %s148, 64, [#allocation2], [#allocation3]
        $region16: #{yolo_loss_pallas.1} parent=11 // pred_fallthru
          _
      $region12: #{yolo_loss_pallas.1} parent=5 // pred_fallthru
        _
      %p151 = scmp.lt.s32.totalorder %s10, 3
      // Predicated region
      $region17: #{yolo_loss_pallas.1} parent=5 // pred_check
        %p152 = pneg %p151
      $region18: #{yolo_loss_pallas.1} parent=5 // pred_check_branch
        %154 = sbr.rel (%p152) target = $region20
      $region19: #{yolo_loss_pallas.1} parent=5 // pred_region
        // Predicated region
        $region21: #{yolo_loss_pallas.1} parent=19 // pred_check
          %p155 = pneg %p65
        $region22: #{yolo_loss_pallas.1} parent=19 // pred_check_branch
          %157 = sbr.rel (%p155) target = $region24
        $region23: #{yolo_loss_pallas.1} parent=19 // pred_region
          %s158 = sand.u32 %s55, 1
          %s159 = sand.u32 %s55, 1
          %s160 = smul.addr %s159, 72
          %s161 = scalar_lea.vmem [#allocation4], %s160
          %s162 = sadd.s32 %s18, %s17
          %s163 = smul.addr %s162, 8
          %s164 = scalar_lea.vmem %s1, %s163
          // Predicated region
          $region25: #{yolo_loss_pallas.1} parent=23 // pred_check
            _
          $region26: #{yolo_loss_pallas.1} parent=23 // pred_check_branch
            %166 = sbr.rel (0) target = $region28
          $region27: #{yolo_loss_pallas.1} parent=23 // pred_region
            // Predicated region
            $region29: #{yolo_loss_pallas.1} parent=27 // pred_check
              _
            $region30: #{yolo_loss_pallas.1} parent=27 // pred_check_branch
              %168 = sbr.rel (0) target = $region32
            $region31: #{yolo_loss_pallas.1} parent=27 // pred_region
              // Predicated region
              $region44: #{yolo_loss_pallas.1} parent=31 // pred_check
                _
              $region45: #{yolo_loss_pallas.1} parent=31 // pred_check_branch
                %199 = sbr.rel (0) target = $region47
              $region46: #{yolo_loss_pallas.1} parent=31 // pred_region
                loop: start=0, step=1, limit=1
                $region48: #{yolo_loss_pallas.1} parent=46 // loop_pre_header
                  _
                $region49: #{yolo_loss_pallas.1} parent=46 // loop_header
                  %s201 = sphi 0, %s205
                  %p202 = scmp.ge.s32.totalorder %s201, 1
                  %s206 = sphi %s164, %s164
                  %s207 = sphi %s161, %s161
                $region50: #{yolo_loss_pallas.1} parent=46 // loop_header_branch
                  %204 = sbr.rel (%p202) target = $region54
                $region51: #{yolo_loss_pallas.1} parent=46 // loop_body
                  %v208 = vld [vmem:[%s206] sm:$0xff]
                  %209 = vst [vmem:[%s207] sm:$0xff] %v208
                  %v210 = vld [vmem:[%s206 + $0x18] sm:$0xff]
                  %211 = vst [vmem:[%s207 + $0x8] sm:$0xff] %v210
                  %v212 = vld [vmem:[%s206 + $0x30] sm:$0xff]
                  %213 = vst [vmem:[%s207 + $0x10] sm:$0xff] %v212
                  %v214 = vld [vmem:[%s206 + $0x48] sm:$0xff]
                  %215 = vst [vmem:[%s207 + $0x18] sm:$0xff] %v214
                  %v216 = vld [vmem:[%s206 + $0x60] sm:$0xff]
                  %217 = vst [vmem:[%s207 + $0x20] sm:$0xff] %v216
                  %v218 = vld [vmem:[%s206 + $0x78] sm:$0xff]
                  %219 = vst [vmem:[%s207 + $0x28] sm:$0xff] %v218
                  %v220 = vld [vmem:[%s206 + $0x90] sm:$0xff]
                  %221 = vst [vmem:[%s207 + $0x30] sm:$0xff] %v220
                  %v222 = vld [vmem:[%s206 + $0xa8] sm:$0xff]
                  %223 = vst [vmem:[%s207 + $0x38] sm:$0xff] %v222
                  %v224 = vld [vmem:[%s206 + $0xc0] sm:$0xff]
                  %225 = vst [vmem:[%s207 + $0x40] sm:$0xff] %v224
                $region52: #{yolo_loss_pallas.1} parent=46 // loop_footer
                  %s205 = sadd.s32 1, %s201
                $region53: #{yolo_loss_pallas.1} parent=46 // loop_footer_branch
                  %200 = sbr.rel target = $region49
                $region54: #{yolo_loss_pallas.1} parent=46 // loop_exit
                  _
              $region47: #{yolo_loss_pallas.1} parent=31 // pred_fallthru
                _
              // Predicated region
              $region55: #{yolo_loss_pallas.1} parent=31 // pred_check
                _
              $region56: #{yolo_loss_pallas.1} parent=31 // pred_check_branch
                %227 = sbr.rel target = $region58
              $region57: #{yolo_loss_pallas.1} parent=31 // pred_region
                _
              $region58: #{yolo_loss_pallas.1} parent=31 // pred_fallthru
                _
            $region32: #{yolo_loss_pallas.1} parent=27 // pred_fallthru
              _
            // Predicated region
            $region33: #{yolo_loss_pallas.1} parent=27 // pred_check
              _
            $region34: #{yolo_loss_pallas.1} parent=27 // pred_check_branch
              %170 = sbr.rel target = $region36
            $region35: #{yolo_loss_pallas.1} parent=27 // pred_region
              loop: start=0, step=1, limit=1
              $region37: #{yolo_loss_pallas.1} parent=35 // loop_pre_header
                _
              $region38: #{yolo_loss_pallas.1} parent=35 // loop_header
                %s173 = sphi 0, %s177
                %p174 = scmp.ge.s32.totalorder %s173, 1
                %s178 = sphi %s164, %s164
                %s179 = sphi %s161, %s161
              $region39: #{yolo_loss_pallas.1} parent=35 // loop_header_branch
                %176 = sbr.rel (%p174) target = $region43
              $region40: #{yolo_loss_pallas.1} parent=35 // loop_body
                %v180 = vld [vmem:[%s178] sm:$0xff]
                %181 = vst [vmem:[%s179] sm:$0xff] %v180
                %v182 = vld [vmem:[%s178 + $0x18] sm:$0xff]
                %183 = vst [vmem:[%s179 + $0x8] sm:$0xff] %v182
                %v184 = vld [vmem:[%s178 + $0x30] sm:$0xff]
                %185 = vst [vmem:[%s179 + $0x10] sm:$0xff] %v184
                %v186 = vld [vmem:[%s178 + $0x48] sm:$0xff]
                %187 = vst [vmem:[%s179 + $0x18] sm:$0xff] %v186
                %v188 = vld [vmem:[%s178 + $0x60] sm:$0xff]
                %189 = vst [vmem:[%s179 + $0x20] sm:$0xff] %v188
                %v190 = vld [vmem:[%s178 + $0x78] sm:$0xff]
                %191 = vst [vmem:[%s179 + $0x28] sm:$0xff] %v190
                %v192 = vld [vmem:[%s178 + $0x90] sm:$0xff]
                %193 = vst [vmem:[%s179 + $0x30] sm:$0xff] %v192
                %v194 = vld [vmem:[%s178 + $0xa8] sm:$0xff]
                %195 = vst [vmem:[%s179 + $0x38] sm:$0xff] %v194
                %v196 = vld [vmem:[%s178 + $0xc0] sm:$0xff]
                %197 = vst [vmem:[%s179 + $0x40] sm:$0xff] %v196
              $region41: #{yolo_loss_pallas.1} parent=35 // loop_footer
                %s177 = sadd.s32 1, %s173
              $region42: #{yolo_loss_pallas.1} parent=35 // loop_footer_branch
                %172 = sbr.rel target = $region38
              $region43: #{yolo_loss_pallas.1} parent=35 // loop_exit
                _
            $region36: #{yolo_loss_pallas.1} parent=27 // pred_fallthru
              _
          $region28: #{yolo_loss_pallas.1} parent=23 // pred_fallthru
            _
          %228 = vnop
        $region24: #{yolo_loss_pallas.1} parent=19 // pred_fallthru
          _
        // Predicated region
        $region59: #{yolo_loss_pallas.1} parent=19 // pred_check
          %p229 = pneg %p93
        $region60: #{yolo_loss_pallas.1} parent=19 // pred_check_branch
          %231 = sbr.rel (%p229) target = $region62
        $region61: #{yolo_loss_pallas.1} parent=19 // pred_region
          %s232 = sand.u32 %s83, 1
          %s233 = sand.u32 %s83, 1
          %s234 = smul.addr %s233, 48
          %s235 = scalar_lea.vmem [#allocation5], %s234
          %s236 = sadd.s32 %s18, %s17
          %s237 = smul.addr %s236, 8
          %s238 = scalar_lea.vmem %s2, %s237
          // Predicated region
          $region63: #{yolo_loss_pallas.1} parent=61 // pred_check
            _
          $region64: #{yolo_loss_pallas.1} parent=61 // pred_check_branch
            %240 = sbr.rel (0) target = $region66
          $region65: #{yolo_loss_pallas.1} parent=61 // pred_region
            // Predicated region
            $region67: #{yolo_loss_pallas.1} parent=65 // pred_check
              _
            $region68: #{yolo_loss_pallas.1} parent=65 // pred_check_branch
              %242 = sbr.rel (0) target = $region70
            $region69: #{yolo_loss_pallas.1} parent=65 // pred_region
              // Predicated region
              $region82: #{yolo_loss_pallas.1} parent=69 // pred_check
                _
              $region83: #{yolo_loss_pallas.1} parent=69 // pred_check_branch
                %267 = sbr.rel (0) target = $region85
              $region84: #{yolo_loss_pallas.1} parent=69 // pred_region
                loop: start=0, step=1, limit=1
                $region86: #{yolo_loss_pallas.1} parent=84 // loop_pre_header
                  _
                $region87: #{yolo_loss_pallas.1} parent=84 // loop_header
                  %s269 = sphi 0, %s273
                  %p270 = scmp.ge.s32.totalorder %s269, 1
                  %s274 = sphi %s238, %s238
                  %s275 = sphi %s235, %s235
                $region88: #{yolo_loss_pallas.1} parent=84 // loop_header_branch
                  %272 = sbr.rel (%p270) target = $region92
                $region89: #{yolo_loss_pallas.1} parent=84 // loop_body
                  %v276 = vld [vmem:[%s274] sm:$0xff]
                  %277 = vst [vmem:[%s275] sm:$0xff] %v276
                  %v278 = vld [vmem:[%s274 + $0x18] sm:$0xff]
                  %279 = vst [vmem:[%s275 + $0x8] sm:$0xff] %v278
                  %v280 = vld [vmem:[%s274 + $0x30] sm:$0xff]
                  %281 = vst [vmem:[%s275 + $0x10] sm:$0xff] %v280
                  %v282 = vld [vmem:[%s274 + $0x48] sm:$0xff]
                  %283 = vst [vmem:[%s275 + $0x18] sm:$0xff] %v282
                  %v284 = vld [vmem:[%s274 + $0x60] sm:$0xff]
                  %285 = vst [vmem:[%s275 + $0x20] sm:$0xff] %v284
                  %v286 = vld [vmem:[%s274 + $0x78] sm:$0xff]
                  %287 = vst [vmem:[%s275 + $0x28] sm:$0xff] %v286
                $region90: #{yolo_loss_pallas.1} parent=84 // loop_footer
                  %s273 = sadd.s32 1, %s269
                $region91: #{yolo_loss_pallas.1} parent=84 // loop_footer_branch
                  %268 = sbr.rel target = $region87
                $region92: #{yolo_loss_pallas.1} parent=84 // loop_exit
                  _
              $region85: #{yolo_loss_pallas.1} parent=69 // pred_fallthru
                _
              // Predicated region
              $region93: #{yolo_loss_pallas.1} parent=69 // pred_check
                _
              $region94: #{yolo_loss_pallas.1} parent=69 // pred_check_branch
                %289 = sbr.rel target = $region96
              $region95: #{yolo_loss_pallas.1} parent=69 // pred_region
                _
              $region96: #{yolo_loss_pallas.1} parent=69 // pred_fallthru
                _
            $region70: #{yolo_loss_pallas.1} parent=65 // pred_fallthru
              _
            // Predicated region
            $region71: #{yolo_loss_pallas.1} parent=65 // pred_check
              _
            $region72: #{yolo_loss_pallas.1} parent=65 // pred_check_branch
              %244 = sbr.rel target = $region74
            $region73: #{yolo_loss_pallas.1} parent=65 // pred_region
              loop: start=0, step=1, limit=1
              $region75: #{yolo_loss_pallas.1} parent=73 // loop_pre_header
                _
              $region76: #{yolo_loss_pallas.1} parent=73 // loop_header
                %s247 = sphi 0, %s251
                %p248 = scmp.ge.s32.totalorder %s247, 1
                %s252 = sphi %s238, %s238
                %s253 = sphi %s235, %s235
              $region77: #{yolo_loss_pallas.1} parent=73 // loop_header_branch
                %250 = sbr.rel (%p248) target = $region81
              $region78: #{yolo_loss_pallas.1} parent=73 // loop_body
                %v254 = vld [vmem:[%s252] sm:$0xff]
                %255 = vst [vmem:[%s253] sm:$0xff] %v254
                %v256 = vld [vmem:[%s252 + $0x18] sm:$0xff]
                %257 = vst [vmem:[%s253 + $0x8] sm:$0xff] %v256
                %v258 = vld [vmem:[%s252 + $0x30] sm:$0xff]
                %259 = vst [vmem:[%s253 + $0x10] sm:$0xff] %v258
                %v260 = vld [vmem:[%s252 + $0x48] sm:$0xff]
                %261 = vst [vmem:[%s253 + $0x18] sm:$0xff] %v260
                %v262 = vld [vmem:[%s252 + $0x60] sm:$0xff]
                %263 = vst [vmem:[%s253 + $0x20] sm:$0xff] %v262
                %v264 = vld [vmem:[%s252 + $0x78] sm:$0xff]
                %265 = vst [vmem:[%s253 + $0x28] sm:$0xff] %v264
              $region79: #{yolo_loss_pallas.1} parent=73 // loop_footer
                %s251 = sadd.s32 1, %s247
              $region80: #{yolo_loss_pallas.1} parent=73 // loop_footer_branch
                %246 = sbr.rel target = $region76
              $region81: #{yolo_loss_pallas.1} parent=73 // loop_exit
                _
            $region74: #{yolo_loss_pallas.1} parent=65 // pred_fallthru
              _
          $region66: #{yolo_loss_pallas.1} parent=61 // pred_fallthru
            _
          %290 = vnop
        $region62: #{yolo_loss_pallas.1} parent=19 // pred_fallthru
          _
      $region20: #{yolo_loss_pallas.1} parent=5 // pred_fallthru
        _
      %p291 = scmp.le.s32.totalorder 1, %s10
      %p292 = scmp.lt.s32.totalorder %s10, 4
      %p293 = pnand %p291, %p292
      %p294 = pneg %p293
      // Predicated region
      $region97: #{yolo_loss_pallas.1} parent=5 // pred_check
        _
      $region98: #{yolo_loss_pallas.1} parent=5 // pred_check_branch
        %296 = sbr.rel (%p293) target = $region100
      $region99: #{yolo_loss_pallas.1} parent=5 // pred_region
        %s297 = ssub.s32 %s10, 1
        // Predicated region
        $region101: #{yolo_loss_pallas.1} parent=99 // pred_check
          %p298 = pneg %p43
        $region102: #{yolo_loss_pallas.1} parent=99 // pred_check_branch
          %300 = sbr.rel (%p298) target = $region104
        $region103: #{yolo_loss_pallas.1} parent=99 // pred_region
          %301 = dma.done [#allocation3], 64
        $region104: #{yolo_loss_pallas.1} parent=99 // pred_fallthru
          _
        %s302 = sand.u32 %s58, 1
        %s303 = sand.u32 %s58, 1
        %s304 = smul.addr %s303, 72
        %s305 = scalar_lea.vmem [#allocation4], %s304
        // Predicated region
        $region105: #{yolo_loss_pallas.1} parent=99 // pred_check
          %p306 = pneg %p71
        $region106: #{yolo_loss_pallas.1} parent=99 // pred_check_branch
          %308 = sbr.rel (%p306) target = $region108
        $region107: #{yolo_loss_pallas.1} parent=99 // pred_region
          _
        $region108: #{yolo_loss_pallas.1} parent=99 // pred_fallthru
          _
        %s309 = sand.u32 %s86, 1
        %s310 = sand.u32 %s86, 1
        %s311 = smul.addr %s310, 48
        %s312 = scalar_lea.vmem [#allocation5], %s311
        // Predicated region
        $region109: #{yolo_loss_pallas.1} parent=99 // pred_check
          %p313 = pneg %p99
        $region110: #{yolo_loss_pallas.1} parent=99 // pred_check_branch
          %315 = sbr.rel (%p313) target = $region112
        $region111: #{yolo_loss_pallas.1} parent=99 // pred_region
          _
        $region112: #{yolo_loss_pallas.1} parent=99 // pred_fallthru
          _
        %316 = sfence
        %p317 = pneg %p43
        %p318 = pneg %p40
        %s319 = sand.u32 %s58, 1
        %s320 = sand.u32 %s58, 1
        %s321 = smul.addr %s320, 72
        %s322 = scalar_lea.vmem [#allocation4], %s321
        %p323 = pneg %p71
        %p324 = pneg %p68
        %s325 = sand.u32 %s86, 1
        %s326 = sand.u32 %s86, 1
        %s327 = smul.addr %s326, 48
        %s328 = scalar_lea.vmem [#allocation5], %s327
        %p329 = pneg %p99
        %p330 = pneg %p96
        %p331 = pneg %p125
        %p332 = pneg %p122
        %s333 = sand.u32 %s112, 1
        %s334 = sand.u32 %s112, 1
        %s335 = smul.addr %s334, 32
        %s336 = scalar_lea.vmem [#allocation6], %s335
        %p337 = scmp.eq.s32.totalorder %s20, 0
        // Predicated region
        $region113: #{yolo_loss_pallas.1} parent=99 // pred_check
          %p338 = pneg %p337
        $region114: #{yolo_loss_pallas.1} parent=99 // pred_check_branch
          %340 = sbr.rel (%p338) target = $region116
        $region115: #{yolo_loss_pallas.1} parent=99 // pred_region
          %341 = vst [vmem:[%s336] sm:$0xff] 0.0
          %342 = vst [vmem:[%s336 + $0x8] sm:$0xff] 0.0
          %343 = vst [vmem:[%s336 + $0x10] sm:$0xff] 0.0
          %344 = vst [vmem:[%s336 + $0x18] sm:$0xff] 0.0
        $region116: #{yolo_loss_pallas.1} parent=99 // pred_fallthru
          _
        %s345 = smul.u32 %s19, 128
        %s346 = sld [smem:[#allocation2 + %s345]]
        %s347 = sadd.s32 %s345, 1
        %s348 = sld [smem:[#allocation2 + %s347]]
        %s349 = sadd.s32 %s345, 2
        %s350 = sld [smem:[#allocation2 + %s349]]
        %s351 = sadd.s32 %s345, 3
        %s352 = sld [smem:[#allocation2 + %s351]]
        %v353 = vlaneseq
        %v354 = vshrl.u32 %v353, 7
        %v355 = vmul.u32 %v354, 128
        %v356 = vlaneseq
        %v357 = vand.u32 %v356, 127
        %v358 = vadd.s32 %v355, %v357
        %s359 = smul.u32 %s20, 1024
        %s360 = smul.u32 0, 128
        %s361 = sadd.s32 %s359, %s360
        %v362 = vstv %s361
        %v363 = vadd.s32 %v358, %v362
        %vm364 = vcmp.lt.s32.totalorder %v363, 128
        %v365 = vld [vmem:[%s312] sm:$0xff]
        %vm366 = vcmp.eq.f32.partialorder %v365, 1.0
        %vm367 = vmand %vm364, %vm366
        %vm368 = vcmp.eq.f32.partialorder %v365, 0.0
        %vm369 = vmand %vm364, %vm368
        %v370 = vld [vmem:[%s305] sm:$0xff]
        %v371 = vand.u32 2147483647, %v370
        %v372 = vsub.f32 0.0, %v371
        %v373 = vmul.f32 %v372, 1.442695
        %v374 = vpow.pop %v373
        %v375 = vmax.f32 %v370, 0.0
        %v376 = vmul.f32 %v370, %v365
        %v377 = vsub.f32 %v375, %v376
        %v378 = vadd.f32 %v374, 1.0
        %v379 = vlog2.pop %v378
        %v380 = vmul.f32 %v379, 0.6931472
        %v381 = vmul.f32 -0.5, %v374
        %v382 = vadd.f32 %v381, 1.0
        %v383 = vmul.f32 %v382, %v374
        %v384 = vand.u32 2147483647, %v374
        %vm385 = vcmp.lt.f32.partialorder %v384, 0.0004427343
        %v386 = vsel %vm385, %v383, %v380
        %v387 = vadd.f32 %v377, %v386
        %v388 = vadd.f32 %v374, 1.0
        %v389 = vrcp.pop %v388
        %vm390 = vcmp.ge.f32.partialorder %v370, 0.0
        %v391 = vmul.f32 %v374, %v389
        %v392 = vsel %vm390, %v389, %v391
        %s393 = sadd.s32 0, 8
        %s394 = scalar_lea.vmem %s305, %s393 [#allocation4]
        %v395 = vld [vmem:[%s394] sm:$0xff]
        %v396 = vxor.u32 %v395, 2147483648
        %v397 = vmul.f32 %v396, 1.442695
        %v398 = vpow.pop %v397
        %v399 = vadd.f32 %v398, 1.0
        %v400 = vrcp.pop %v399
        %v401 = vmul.f32 1.0, %v400
        %s402 = sadd.s32 0, 16
        %s403 = scalar_lea.vmem %s305, %s402 [#allocation4]
        %v404 = vld [vmem:[%s403] sm:$0xff]
        %v405 = vxor.u32 %v404, 2147483648
        %v406 = vmul.f32 %v405, 1.442695
        %v407 = vpow.pop %v406
        %v408 = vadd.f32 %v407, 1.0
        %v409 = vrcp.pop %v408
        %v410 = vmul.f32 1.0, %v409
        %s411 = sadd.s32 0, 24
        %s412 = scalar_lea.vmem %s305, %s411 [#allocation4]
        %v413 = vld [vmem:[%s412] sm:$0xff]
        %s414 = sadd.s32 0, 32
        %s415 = scalar_lea.vmem %s305, %s414 [#allocation4]
        %v416 = vld [vmem:[%s415] sm:$0xff]
        %v417 = vmul.f32 %v413, 1.442695
        %v418 = vpow.pop %v417
        %v419 = vstv %s346
        %v420 = vmul.f32 %v418, %v419
        %v421 = vmul.f32 %v416, 1.442695
        %v422 = vpow.pop %v421
        %v423 = vstv %s348
        %v424 = vmul.f32 %v422, %v423
        %s425 = scalar_lea.vmem %s312, %s393 [#allocation5]
        %v426 = vld [vmem:[%s425] sm:$0xff]
        %s427 = scalar_lea.vmem %s312, %s402 [#allocation5]
        %v428 = vld [vmem:[%s427] sm:$0xff]
        %s429 = scalar_lea.vmem %s312, %s411 [#allocation5]
        %v430 = vld [vmem:[%s429] sm:$0xff]
        %s431 = scalar_lea.vmem %s312, %s414 [#allocation5]
        %v432 = vld [vmem:[%s431] sm:$0xff]
        %v433 = vmul.f32 %v420, 0.5
        %v434 = vadd.f32 %v401, %v433
        %v435 = vmul.f32 %v430, 0.5
        %v436 = vadd.f32 %v426, %v435
        %v437 = vmin.f32 %v434, %v436
        %v438 = vsub.f32 %v401, %v433
        %v439 = vsub.f32 %v426, %v435
        %v440 = vmax.f32 %v438, %v439
        %v441 = vsub.f32 %v437, %v440
        %v442 = vmax.f32 %v441, 0.0
        %v443 = vmul.f32 %v424, 0.5
        %v444 = vadd.f32 %v410, %v443
        %v445 = vmul.f32 %v432, 0.5
        %v446 = vadd.f32 %v428, %v445
        %v447 = vmin.f32 %v444, %v446
        %v448 = vsub.f32 %v410, %v443
        %v449 = vsub.f32 %v428, %v445
        %v450 = vmax.f32 %v448, %v449
        %v451 = vsub.f32 %v447, %v450
        %v452 = vmax.f32 %v451, 0.0
        %v453 = vmul.f32 %v442, %v452
        %v454 = vmul.f32 %v420, %v424
        %v455 = vand.u32 2147483647, %v454
        %v456 = vmul.f32 %v430, %v432
        %v457 = vand.u32 2147483647, %v456
        %v458 = vadd.f32 %v455, %v457
        %v459 = vsub.f32 %v458, %v453
        %v460 = vadd.f32 %v459, 1e-06
        %v461 = vrcp.pop %v460
        %v462 = vmul.f32 %v453, %v461
        %v463 = vmul.f32 %v462, %v365
        %v464 = vsub.f32 %v392, %v463
        %v465 = vmul.f32 %v464, %v464
        %v466 = vstv %s350
        %v467 = vmul.f32 %v430, %v466
        %v468 = vadd.f32 %v467, 1e-06
        %v469 = vlog2.pop %v468
        %v470 = vmul.f32 %v469, 0.6931472
        %v471 = vstv %s352
        %v472 = vmul.f32 %v432, %v471
        %v473 = vadd.f32 %v472, 1e-06
        %v474 = vlog2.pop %v473
        %v475 = vmul.f32 %v474, 0.6931472
        %v476 = vsub.f32 %v401, %v426
        %v477 = vmul.f32 %v476, %v476
        %v478 = vsub.f32 %v410, %v428
        %v479 = vmul.f32 %v478, %v478
        %v480 = vadd.f32 %v477, %v479
        %v481 = vsub.f32 %v413, %v470
        %v482 = vmul.f32 %v481, %v481
        %v483 = vadd.f32 %v480, %v482
        %v484 = vsub.f32 %v416, %v475
        %v485 = vmul.f32 %v484, %v484
        %v486 = vadd.f32 %v483, %v485
        %s487 = sadd.s32 0, 40
        %s488 = scalar_lea.vmem %s312, %s487 [#allocation5]
        %v489 = vld [vmem:[%s488] sm:$0xff]
        %s490 = scalar_lea.vmem %s305, %s487 [#allocation4]
        %v491 = vld [vmem:[%s490] sm:$0xff]
        %s492 = sadd.s32 0, 48
        %s493 = scalar_lea.vmem %s305, %s492 [#allocation4]
        %v494 = vld [vmem:[%s493] sm:$0xff]
        %v495 = vmax.f32 %v491, %v494
        %s496 = sadd.s32 0, 56
        %s497 = scalar_lea.vmem %s305, %s496 [#allocation4]
        %v498 = vld [vmem:[%s497] sm:$0xff]
        %v499 = vmax.f32 %v495, %v498
        %s500 = sadd.s32 0, 64
        %s501 = scalar_lea.vmem %s305, %s500 [#allocation4]
        %v502 = vld [vmem:[%s501] sm:$0xff]
        %v503 = vmax.f32 %v499, %v502
        %v504 = vsub.f32 %v491, %v503
        %v505 = vmul.f32 %v504, 1.442695
        %v506 = vpow.pop %v505
        %v507 = vadd.f32 %v506, 0.0
        %vm508 = vcmp.eq.f32.partialorder %v489, 0.0
        %v509 = vsel %vm508, %v491, 0.0
        %v510 = vadd.f32 %v509, 0.0
        %v511 = vsub.f32 %v494, %v503
        %v512 = vmul.f32 %v511, 1.442695
        %v513 = vpow.pop %v512
        %v514 = vadd.f32 %v507, %v513
        %vm515 = vcmp.eq.f32.partialorder %v489, 1.0
        %v516 = vsel %vm515, %v494, 0.0
        %v517 = vadd.f32 %v510, %v516
        %v518 = vsub.f32 %v498, %v503
        %v519 = vmul.f32 %v518, 1.442695
        %v520 = vpow.pop %v519
        %v521 = vadd.f32 %v514, %v520
        %vm522 = vcmp.eq.f32.partialorder %v489, 2.0
        %v523 = vsel %vm522, %v498, 0.0
        %v524 = vadd.f32 %v517, %v523
        %v525 = vsub.f32 %v502, %v503
        %v526 = vmul.f32 %v525, 1.442695
        %v527 = vpow.pop %v526
        %v528 = vadd.f32 %v521, %v527
        %vm529 = vcmp.eq.f32.partialorder %v489, 3.0
        %v530 = vsel %vm529, %v502, 0.0
        %v531 = vadd.f32 %v524, %v530
        %v532 = vlog2.pop %v528
        %v533 = vmul.f32 %v532, 0.6931472
        %v534 = vadd.f32 %v503, %v533
        %v535 = vsub.f32 %v534, %v531
        %v536 = vsel %vm369, %v387, 0.0
        %v537 = vadd.f32 %v536, 0.0
        %v538 = vsel %vm369, 1.0, 0.0
        %v539 = vadd.f32 %v538, 0.0
        %v540 = vmul.f32 %v486, 0.25
        %v541 = vadd.f32 %v465, %v540
        %v542 = vadd.f32 %v541, %v535
        %v543 = vsel %vm367, %v542, 0.0
        %v544 = vadd.f32 %v543, 0.0
        %v545 = vsel %vm367, 1.0, 0.0
        %v546 = vadd.f32 %v545, 0.0
        %v547 = vld [vmem:[%s336] sm:$0xff]
        %v548 = vadd.f32 %v547, %v537
        %549 = vst [vmem:[%s336] sm:$0xff] %v548
        %v550 = vld [vmem:[%s336 + $0x8] sm:$0xff]
        %v551 = vadd.f32 %v550, %v539
        %552 = vst [vmem:[%s336 + $0x8] sm:$0xff] %v551
        %v553 = vld [vmem:[%s336 + $0x10] sm:$0xff]
        %v554 = vadd.f32 %v553, %v544
        %555 = vst [vmem:[%s336 + $0x10] sm:$0xff] %v554
        %v556 = vld [vmem:[%s336 + $0x18] sm:$0xff]
        %v557 = vadd.f32 %v556, %v546
        %558 = vst [vmem:[%s336 + $0x18] sm:$0xff] %v557
        %s559 = sand.u32 %s112, 1
        %s560 = sand.u32 %s112, 1
        %s561 = smul.addr %s560, 32
        %s562 = scalar_lea.vmem [#allocation6], %s561
        // Predicated region
        $region117: #{yolo_loss_pallas.1} parent=99 // pred_check
          %p563 = pneg %p122
        $region118: #{yolo_loss_pallas.1} parent=99 // pred_check_branch
          %565 = sbr.rel (%p563) target = $region120
        $region119: #{yolo_loss_pallas.1} parent=99 // pred_region
          %s566 = smul.addr %s19, 8
          %s567 = scalar_lea.vmem %s3, %s566
          // Predicated region
          $region121: #{yolo_loss_pallas.1} parent=119 // pred_check
            _
          $region122: #{yolo_loss_pallas.1} parent=119 // pred_check_branch
            %569 = sbr.rel (0) target = $region124
          $region123: #{yolo_loss_pallas.1} parent=119 // pred_region
            // Predicated region
            $region125: #{yolo_loss_pallas.1} parent=123 // pred_check
              _
            $region126: #{yolo_loss_pallas.1} parent=123 // pred_check_branch
              %571 = sbr.rel (0) target = $region128
            $region127: #{yolo_loss_pallas.1} parent=123 // pred_region
              // Predicated region
              $region140: #{yolo_loss_pallas.1} parent=127 // pred_check
                _
              $region141: #{yolo_loss_pallas.1} parent=127 // pred_check_branch
                %592 = sbr.rel (0) target = $region143
              $region142: #{yolo_loss_pallas.1} parent=127 // pred_region
                loop: start=0, step=1, limit=1
                $region144: #{yolo_loss_pallas.1} parent=142 // loop_pre_header
                  _
                $region145: #{yolo_loss_pallas.1} parent=142 // loop_header
                  %s594 = sphi 0, %s598
                  %p595 = scmp.ge.s32.totalorder %s594, 1
                  %s599 = sphi %s562, %s562
                  %s600 = sphi %s567, %s567
                $region146: #{yolo_loss_pallas.1} parent=142 // loop_header_branch
                  %597 = sbr.rel (%p595) target = $region150
                $region147: #{yolo_loss_pallas.1} parent=142 // loop_body
                  %v601 = vld [vmem:[%s599] sm:$0xff]
                  %602 = vst [vmem:[%s600] sm:$0xff] %v601
                  %v603 = vld [vmem:[%s599 + $0x8] sm:$0xff]
                  %604 = vst [vmem:[%s600 + $0x18] sm:$0xff] %v603
                  %v605 = vld [vmem:[%s599 + $0x10] sm:$0xff]
                  %606 = vst [vmem:[%s600 + $0x30] sm:$0xff] %v605
                  %v607 = vld [vmem:[%s599 + $0x18] sm:$0xff]
                  %608 = vst [vmem:[%s600 + $0x48] sm:$0xff] %v607
                $region148: #{yolo_loss_pallas.1} parent=142 // loop_footer
                  %s598 = sadd.s32 1, %s594
                $region149: #{yolo_loss_pallas.1} parent=142 // loop_footer_branch
                  %593 = sbr.rel target = $region145
                $region150: #{yolo_loss_pallas.1} parent=142 // loop_exit
                  _
              $region143: #{yolo_loss_pallas.1} parent=127 // pred_fallthru
                _
              // Predicated region
              $region151: #{yolo_loss_pallas.1} parent=127 // pred_check
                _
              $region152: #{yolo_loss_pallas.1} parent=127 // pred_check_branch
                %610 = sbr.rel target = $region154
              $region153: #{yolo_loss_pallas.1} parent=127 // pred_region
                _
              $region154: #{yolo_loss_pallas.1} parent=127 // pred_fallthru
                _
            $region128: #{yolo_loss_pallas.1} parent=123 // pred_fallthru
              _
            // Predicated region
            $region129: #{yolo_loss_pallas.1} parent=123 // pred_check
              _
            $region130: #{yolo_loss_pallas.1} parent=123 // pred_check_branch
              %573 = sbr.rel target = $region132
            $region131: #{yolo_loss_pallas.1} parent=123 // pred_region
              loop: start=0, step=1, limit=1
              $region133: #{yolo_loss_pallas.1} parent=131 // loop_pre_header
                _
              $region134: #{yolo_loss_pallas.1} parent=131 // loop_header
                %s576 = sphi 0, %s580
                %p577 = scmp.ge.s32.totalorder %s576, 1
                %s581 = sphi %s562, %s562
                %s582 = sphi %s567, %s567
              $region135: #{yolo_loss_pallas.1} parent=131 // loop_header_branch
                %579 = sbr.rel (%p577) target = $region139
              $region136: #{yolo_loss_pallas.1} parent=131 // loop_body
                %v583 = vld [vmem:[%s581] sm:$0xff]
                %584 = vst [vmem:[%s582] sm:$0xff] %v583
                %v585 = vld [vmem:[%s581 + $0x8] sm:$0xff]
                %586 = vst [vmem:[%s582 + $0x18] sm:$0xff] %v585
                %v587 = vld [vmem:[%s581 + $0x10] sm:$0xff]
                %588 = vst [vmem:[%s582 + $0x30] sm:$0xff] %v587
                %v589 = vld [vmem:[%s581 + $0x18] sm:$0xff]
                %590 = vst [vmem:[%s582 + $0x48] sm:$0xff] %v589
              $region137: #{yolo_loss_pallas.1} parent=131 // loop_footer
                %s580 = sadd.s32 1, %s576
              $region138: #{yolo_loss_pallas.1} parent=131 // loop_footer_branch
                %575 = sbr.rel target = $region134
              $region139: #{yolo_loss_pallas.1} parent=131 // loop_exit
                _
            $region132: #{yolo_loss_pallas.1} parent=123 // pred_fallthru
              _
          $region124: #{yolo_loss_pallas.1} parent=119 // pred_fallthru
            _
          %611 = vnop
        $region120: #{yolo_loss_pallas.1} parent=99 // pred_fallthru
          _
      $region100: #{yolo_loss_pallas.1} parent=5 // pred_fallthru
        _
      %p612 = scmp.le.s32.totalorder 2, %s10
      // Predicated region
      $region155: #{yolo_loss_pallas.1} parent=5 // pred_check
        %p613 = pneg %p612
      $region156: #{yolo_loss_pallas.1} parent=5 // pred_check_branch
        %615 = sbr.rel (%p613) target = $region158
      $region157: #{yolo_loss_pallas.1} parent=5 // pred_region
        %s616 = ssub.s32 %s10, 2
        // Predicated region
        $region159: #{yolo_loss_pallas.1} parent=157 // pred_check
          %p617 = pneg %p128
        $region160: #{yolo_loss_pallas.1} parent=157 // pred_check_branch
          %619 = sbr.rel (%p617) target = $region162
        $region161: #{yolo_loss_pallas.1} parent=157 // pred_region
          %s620 = sand.u32 %s113, 1
          %s621 = sand.u32 %s113, 1
          %s622 = smul.addr %s621, 32
          %s623 = scalar_lea.vmem [#allocation6], %s622
        $region162: #{yolo_loss_pallas.1} parent=157 // pred_fallthru
          _
      $region158: #{yolo_loss_pallas.1} parent=5 // pred_fallthru
        _
    $region6: #{yolo_loss_pallas.1} parent=1 // loop_footer
      %s14 = sadd.s32 1, %s10
    $region7: #{yolo_loss_pallas.1} parent=1 // loop_footer_branch
      %9 = sbr.rel target = $region3
    $region8: #{yolo_loss_pallas.1} parent=1 // loop_exit
      _
    %624 = vsyncpa [#allocation3], 1
    %s625 = scalar_lea.sflag [#allocation3], 1
    %626 = vsyncpa %s625, 1

</llo_original>
